<compile_context>
chip_gen: v6e
topology: v6e:2x2x1
jax: 0.10.0
libtpu: 0.0.40
codegen_flags: <defaults>
</compile_context>

<pallas_src>
import functools

import jax
import jax.numpy as jnp
from jax.experimental import pallas as pl
from jax.experimental.pallas import tpu as pltpu


IN_DIM = 16
HID_DIM = 8
OUT_DIM = 1

_PACK = 8                          # samples packed per lane-dense row
_ROW_DIM = _PACK * IN_DIM          # 128  (lane-dense z row)
_HID_PACKED = _PACK * HID_DIM      # 64
_OUT_PACKED = _PACK * OUT_DIM      # 8

_TR_MAX = 4096                     # max dense rows per tile  (= 32768 samples)
_TR_SPLIT = 256                    # if R > this, use >= 2 tiles (v7x megacore)


def _round_up(x, m):
    return ((x + m - 1) // m) * m


def _mlp_kernel(z_ref, w1_ref, b1_ref, w2_ref, b2_ref, o_ref):
    # z_ref : (tr, 128) f32   8 samples x 16 features per row (lane-dense)
    # w1_ref: (128, 64) bf16  block-diagonal replicated W1^T, VMEM-resident
    # b1_ref: (1, 64)   f32   b1 tiled 8x
    # w2_ref: (64, 8)   f32   block-diagonal replicated W2^T
    # b2_ref: (1, 8)    f32   b2 tiled 8x
    # o_ref : (tr, 8)   f32   out[r, s] = sigmoid output of sample 8*r + s
    z = z_ref[...].astype(jnp.bfloat16)                 # in-kernel cast (hides under DMA)
    h = jnp.dot(z, w1_ref[...], preferred_element_type=jnp.float32)   # (tr, 64)
    h = jnp.maximum(h + b1_ref[...], 0.0)               # bias + ReLU in f32
    # Second layer stays f32 on the MXU (no bf16 pack of the (tr,64) hidden).
    logits = jnp.dot(h, w2_ref[...], preferred_element_type=jnp.float32) + b2_ref[...]
    o_ref[...] = jax.nn.sigmoid(logits)                 # sigmoid in f32 (EUP)


def _mlp_pallas(z, w1, b1, w2, b2):
    """Fused MLP forward: z (B,16) f32 -> (B,1) f32 via a batch-tiled kernel."""
    batch = z.shape[0]

    # Only pad to the next multiple of 8 (needed for the free reshape to 128
    # lanes); tile-boundary padding is handled by Pallas partial blocks.
    b_pad = _round_up(max(batch, _PACK), _PACK)
    if b_pad != batch:
        z = jnp.pad(z, ((0, b_pad - batch), (0, 0)))
    r = b_pad // _PACK
    z2 = z.reshape(r, _ROW_DIM)                         # free row-major reshape

    # Block-diagonal replicated weights (tiny, built once per call).
    eye = jnp.eye(_PACK, dtype=jnp.float32)
    w1bd = jnp.kron(eye, w1.T).astype(jnp.bfloat16)     # (128, 64)
    w2bd = jnp.kron(eye, w2.T)                          # (64, 8)  f32
    b1bd = jnp.tile(b1, _PACK).reshape(1, _HID_PACKED)  # (1, 64)
    b2bd = jnp.tile(b2, _PACK).reshape(1, _OUT_PACKED)  # (1, 8)

    # Tile selection: single full-extent tile for small batches; otherwise at
    # least 2 tiles (so v7x's two TCs both get work), capped at _TR_MAX rows.
    if r <= _TR_SPLIT:
        tr = r
    else:
        tr = min(_TR_MAX, _round_up(pl.cdiv(r, 2), 8))
    grid = (pl.cdiv(r, tr),)

    # Explicit VMEM budget from *padded* block sizes: z block (tr,128) f32 and
    # out block (tr,8)->(tr,128) f32, double-buffered, plus in-kernel temps
    # (h/logits, also lane-padded) and slack.
    blk_bytes = tr * _ROW_DIM * 4
    vmem_limit = 8 * blk_bytes + (2 << 20)

    flops = 2 * r * (_ROW_DIM * _HID_PACKED + _HID_PACKED * _OUT_PACKED)
    bytes_accessed = (r * _ROW_DIM * 4 + r * _OUT_PACKED * 4
                      + _ROW_DIM * _HID_PACKED * 2
                      + _HID_PACKED * _OUT_PACKED * 4
                      + (_HID_PACKED + _OUT_PACKED) * 4)

    out2 = pl.pallas_call(
        _mlp_kernel,
        out_shape=jax.ShapeDtypeStruct((r, _OUT_PACKED), jnp.float32),
        grid=grid,
        in_specs=[
            pl.BlockSpec((tr, _ROW_DIM), lambda i: (i, 0)),            # z streams
            pl.BlockSpec((_ROW_DIM, _HID_PACKED), lambda i: (0, 0)),   # weights resident
            pl.BlockSpec((1, _HID_PACKED), lambda i: (0, 0)),
            pl.BlockSpec((_HID_PACKED, _OUT_PACKED), lambda i: (0, 0)),
            pl.BlockSpec((1, _OUT_PACKED), lambda i: (0, 0)),
        ],
        out_specs=pl.BlockSpec((tr, _OUT_PACKED), lambda i: (i, 0)),
        compiler_params=pltpu.CompilerParams(
            dimension_semantics=("parallel",),
            vmem_limit_bytes=int(vmem_limit)),
        cost_estimate=pl.CostEstimate(
            flops=flops, transcendentals=b_pad, bytes_accessed=bytes_accessed),
        # NOTE: if profiling shows the z DMA still exposed, add
        # pipeline_mode=pl.Buffered(3) on the z BlockSpec.
    )(z2, w1bd, b1bd, w2bd, b2bd)

    # Row-major (r, 8) flatten is exactly the per-sample output order.
    return out2.reshape(b_pad, OUT_DIM)[:batch]


# --- MLP with explicit VJP (pallas_call has no autodiff rule) ----------------
@jax.custom_vjp
def _mlp_forward(z, w1, b1, w2, b2):
    return _mlp_pallas(z, w1, b1, w2, b2)


def _mlp_fwd(z, w1, b1, w2, b2):
    return _mlp_pallas(z, w1, b1, w2, b2), (z, w1, b1, w2, b2)


def _mlp_bwd(res, g):
    # Plain-JAX backward (tiny math); recomputes activations in f32.
    z, w1, b1, w2, b2 = res
    h_pre = z @ w1.T + b1                                # (B, 8)
    h = jnp.maximum(h_pre, 0.0)
    p = jax.nn.sigmoid(h @ w2.T + b2)                    # (B, 1)
    dlogits = g * p * (1.0 - p)                          # (B, 1)
    dw2 = dlogits.T @ h                                  # (1, 8)
    db2 = jnp.sum(dlogits, axis=0)                       # (1,)
    dh = dlogits @ w2                                    # (B, 8)
    dh_pre = dh * (h_pre > 0).astype(dh.dtype)
    dw1 = dh_pre.T @ z                                   # (8, 16)
    db1 = jnp.sum(dh_pre, axis=0)                        # (8,)
    dz = dh_pre @ w1                                     # (B, 16)
    return dz, dw1, db1, dw2, db2


_mlp_forward.defvjp(_mlp_fwd, _mlp_bwd)


# --- Gradient reversal layer (identity forward, -lambda * grad backward) -----
@functools.partial(jax.custom_vjp, nondiff_argnums=(1,))
def _grl(x, lambda_):
    return x


def _grl_fwd(x, lambda_):
    return x, None


def _grl_bwd(lambda_, _, g):
    return (-lambda_ * g,)


_grl.defvjp(_grl_fwd, _grl_bwd)


def adversary_apply(params, z, lambda_=1.0):
    """Adversary forward: GRL (identity fwd) + fused MLP Pallas kernel.

    lambda_ must be a static Python scalar (nondiff argument of the GRL).
    """
    z = _grl(z, lambda_)
    return _mlp_forward(z, params["w1"], params["b1"], params["w2"], params["b2"])


def init_params(key):
    """PyTorch-style init U(-1/sqrt(fan_in), 1/sqrt(fan_in)); (out,in) weights."""
    k1, k2, k3, k4 = jax.random.split(key, 4)
    bound1 = 1.0 / jnp.sqrt(IN_DIM)
    bound2 = 1.0 / jnp.sqrt(HID_DIM)
    return {
        "w1": jax.random.uniform(k1, (HID_DIM, IN_DIM), jnp.float32, -bound1, bound1),
        "b1": jax.random.uniform(k2, (HID_DIM,), jnp.float32, -bound1, bound1),
        "w2": jax.random.uniform(k3, (OUT_DIM, HID_DIM), jnp.float32, -bound2, bound2),
        "b2": jax.random.uniform(k4, (OUT_DIM,), jnp.float32, -bound2, bound2),
    }


def _reference(p, z):
    """Pure-JAX forward with the same bf16 rounding the kernel applies (layer 1)."""
    zb = z.astype(jnp.bfloat16).astype(jnp.float32)
    w1b = p["w1"].astype(jnp.bfloat16).astype(jnp.float32)
    h = jnp.maximum(zb @ w1b.T + p["b1"], 0.0)
    return jax.nn.sigmoid(h @ p["w2"].T + p["b2"])


if __name__ == "__main__":
    key = jax.random.PRNGKey(0)
    pkey, zkey, zkey2, zkey3 = jax.random.split(key, 4)

    params = init_params(pkey)

    # Small batch, single full-extent tile.
    batch = 8
    z = jax.random.normal(zkey, (batch, IN_DIM), jnp.float32)
    out = jax.block_until_ready(adversary_apply(params, z, lambda_=1.0))
    assert out.shape == (batch, OUT_DIM)
    ref = _reference(params, z)
    assert jnp.allclose(out, ref, atol=1e-3, rtol=1e-3), (
        f"max err {jnp.max(jnp.abs(out - ref))}")

    # Batch not a multiple of 8 (exercises the small tail pad).
    z13 = jax.random.normal(zkey2, (13, IN_DIM), jnp.float32)
    out13 = jax.block_until_ready(adversary_apply(params, z13))
    assert out13.shape == (13, OUT_DIM)
    assert jnp.allclose(out13, _reference(params, z13), atol=1e-3, rtol=1e-3)

    # Multi-tile path with a partial last block (R = 257 > split threshold).
    zbig = jax.random.normal(zkey3, (2056, IN_DIM), jnp.float32)
    outbig = jax.block_until_ready(adversary_apply(params, zbig))
    assert outbig.shape == (2056, OUT_DIM)
    assert jnp.allclose(outbig, _reference(params, zbig), atol=1e-3, rtol=1e-3), (
        f"max err {jnp.max(jnp.abs(outbig - _reference(params, zbig)))}")

    # Backward smoke test: grads flow through the custom_vjp (plain-JAX
    # backward) and the GRL flips the z-gradient.
    loss = lambda p, zz: jnp.sum(adversary_apply(p, zz, 1.0))
    gp, gz = jax.grad(loss, argnums=(0, 1))(params, z)
    jax.block_until_ready((gp, gz))
    assert gz.shape == z.shape

    print("KERNEL_OK")
</pallas_src>

<mosaic_0001>
module attributes {stable_mosaic.version = 11 : i64} {
  func.func @_mlp_kernel(%arg0: i32, %arg1: memref<1x128xf32, #tpu.memory_space<vmem>>, %arg2: memref<128x64xbf16, #tpu.memory_space<vmem>>, %arg3: memref<1x64xf32, #tpu.memory_space<vmem>>, %arg4: memref<64x8xf32, #tpu.memory_space<vmem>>, %arg5: memref<1x8xf32, #tpu.memory_space<vmem>>, %arg6: memref<1x8xf32, #tpu.memory_space<vmem>>) attributes {dimension_semantics = [#tpu.dimension_semantics<parallel>], iteration_bounds = array<i64: 1>, scalar_prefetch = 0 : i64, scratch_operands = 0 : i64, tpu.core_type = #tpu.core_type<tc>, window_params = [{transform_indices = @transform_0, window_bounds = array<i64: 1, 128>}, {pipeline_mode = #tpu.pipeline_mode<synchronous>, transform_indices = @transform_1, window_bounds = array<i64: 128, 64>}, {pipeline_mode = #tpu.pipeline_mode<synchronous>, transform_indices = @transform_2, window_bounds = array<i64: 1, 64>}, {pipeline_mode = #tpu.pipeline_mode<synchronous>, transform_indices = @transform_3, window_bounds = array<i64: 64, 8>}, {pipeline_mode = #tpu.pipeline_mode<synchronous>, transform_indices = @transform_4, window_bounds = array<i64: 1, 8>}, {transform_indices = @transform_5, window_bounds = array<i64: 1, 8>}]} {
    %c0 = arith.constant 0 : index
    %c0_0 = arith.constant 0 : index
    %0 = vector.load %arg1[%c0, %c0_0] : memref<1x128xf32, #tpu.memory_space<vmem>>, vector<1x128xf32>
    %1 = arith.truncf %0 : vector<1x128xf32> to vector<1x128xbf16>
    %c0_1 = arith.constant 0 : index
    %c0_2 = arith.constant 0 : index
    %2 = vector.load %arg2[%c0_1, %c0_2] : memref<128x64xbf16, #tpu.memory_space<vmem>>, vector<128x64xbf16>
    %cst = arith.constant dense<0.000000e+00> : vector<1x64xf32>
    %3 = tpu.matmul %1, %2, %cst {dimension_numbers = #tpu.dot_dimension_numbers<[1], [0], [0], [1], [0, 0, 1, 1], [], []>} : vector<1x128xbf16>, vector<128x64xbf16>, vector<1x64xf32> -> vector<1x64xf32>
    %c0_3 = arith.constant 0 : index
    %c0_4 = arith.constant 0 : index
    %4 = vector.load %arg3[%c0_3, %c0_4] : memref<1x64xf32, #tpu.memory_space<vmem>>, vector<1x64xf32>
    %5 = arith.addf %3, %4 : vector<1x64xf32>
    %cst_5 = arith.constant 0.000000e+00 : f32
    %6 = vector.broadcast %cst_5 : f32 to vector<1x64xf32>
    %7 = arith.maximumf %5, %6 : vector<1x64xf32>
    %c0_6 = arith.constant 0 : index
    %c0_7 = arith.constant 0 : index
    %8 = vector.load %arg4[%c0_6, %c0_7] : memref<64x8xf32, #tpu.memory_space<vmem>>, vector<64x8xf32>
    %cst_8 = arith.constant dense<0.000000e+00> : vector<1x8xf32>
    %9 = tpu.matmul %7, %8, %cst_8 {dimension_numbers = #tpu.dot_dimension_numbers<[1], [0], [0], [1], [0, 0, 1, 1], [], []>} : vector<1x64xf32>, vector<64x8xf32>, vector<1x8xf32> -> vector<1x8xf32>
    %c0_9 = arith.constant 0 : index
    %c0_10 = arith.constant 0 : index
    %10 = vector.load %arg5[%c0_9, %c0_10] : memref<1x8xf32, #tpu.memory_space<vmem>>, vector<1x8xf32>
    %11 = arith.addf %9, %10 : vector<1x8xf32>
    %12 = arith.negf %11 : vector<1x8xf32>
    %13 = math.exp %12 : vector<1x8xf32>
    %cst_11 = arith.constant 1.000000e+00 : f32
    %14 = vector.broadcast %cst_11 : f32 to vector<1x8xf32>
    %15 = arith.addf %14, %13 : vector<1x8xf32>
    %16 = arith.divf %14, %15 : vector<1x8xf32>
    %c0_12 = arith.constant 0 : index
    %c0_13 = arith.constant 0 : index
    %17 = vector.load %arg6[%c0_12, %c0_13] : memref<1x8xf32, #tpu.memory_space<vmem>>, vector<1x8xf32>
    tpu.vector_store %arg6[%c0_12, %c0_13], %16 {strides = array<i32>} : memref<1x8xf32, #tpu.memory_space<vmem>>, vector<1x8xf32>,
    return
  }
  func.func @transform_0(%arg0: i32) -> (i32, i32) {
    %c0_i32 = arith.constant 0 : i32
    %c0_i32_0 = arith.constant 0 : i32
    return %arg0, %c0_i32 : i32, i32
  }
  func.func @transform_1(%arg0: i32) -> (i32, i32) {
    %c0_i32 = arith.constant 0 : i32
    %c0_i32_0 = arith.constant 0 : i32
    %c0_i32_1 = arith.constant 0 : i32
    return %c0_i32, %c0_i32_0 : i32, i32
  }
  func.func @transform_2(%arg0: i32) -> (i32, i32) {
    %c0_i32 = arith.constant 0 : i32
    %c0_i32_0 = arith.constant 0 : i32
    %c0_i32_1 = arith.constant 0 : i32
    return %c0_i32, %c0_i32_0 : i32, i32
  }
  func.func @transform_3(%arg0: i32) -> (i32, i32) {
    %c0_i32 = arith.constant 0 : i32
    %c0_i32_0 = arith.constant 0 : i32
    %c0_i32_1 = arith.constant 0 : i32
    return %c0_i32, %c0_i32_0 : i32, i32
  }
  func.func @transform_4(%arg0: i32) -> (i32, i32) {
    %c0_i32 = arith.constant 0 : i32
    %c0_i32_0 = arith.constant 0 : i32
    %c0_i32_1 = arith.constant 0 : i32
    return %c0_i32, %c0_i32_0 : i32, i32
  }
  func.func @transform_5(%arg0: i32) -> (i32, i32) {
    %c0_i32 = arith.constant 0 : i32
    %c0_i32_0 = arith.constant 0 : i32
    return %arg0, %c0_i32 : i32, i32
  }
}

</mosaic_0001>

<llo_original>
// kernel: tpu_custom_call.1
$region0: #{tpu_custom_call.1}
  #allocation0 [shape = 'u32[]', space=smem, size = 0x4, offset = 0x4, fixed_abs, tag = 'smem constant byte address 0x4 - core index']
  #allocation1 [shape = 'u32[144,128]{1,0:T(1,128)}', space=vmem, size = 0x12000, scoped, tag = 'internal scratch']
  %s0 = inlined_call_operand.vmem [shape: f32[1,128], index: 0, kind: input, shape index: {}]
  %s1 = inlined_call_operand.vmem [shape: bf16[128,64], index: 1, kind: input, shape index: {}]
  %s2 = inlined_call_operand.vmem [shape: f32[1,64], index: 2, kind: input, shape index: {}]
  %s3 = inlined_call_operand.vmem [shape: f32[64,8], index: 3, kind: input, shape index: {}]
  %s4 = inlined_call_operand.vmem [shape: f32[1,8], index: 4, kind: input, shape index: {}]
  %s5 = inlined_call_operand.hbm [shape: f32[1,8], index: 5, kind: output, shape index: {}]
  %s6 = sld [smem:[#allocation0]]
  $region30: #{tpu_custom_call.1} parent=0
    _
  %s8 = ssub.s32 1, %s6
  %s9 = scalar_select 0, %s8, %s6
  $region1: #{tpu_custom_call.1} parent=0
    #allocation2 [shape = 'u8[512]{0}', space=vmem, size = 0x400, scoped, tag = 'output window, operand 0, single buffered']
    #allocation3 [shape = 's32[1]{0}', space=sflag, size = 0x4, scoped, tag = 'scoped memory for tpu_custom_call.1']
    %10 = vsyncpa [#allocation3], 0
    // Predicated region
    $region2: #{tpu_custom_call.1} parent=1 // pred_check
      _
    $region3: #{tpu_custom_call.1} parent=1 // pred_check_branch
      %12 = sbr.rel (0) target = $region5
    $region4: #{tpu_custom_call.1} parent=1 // pred_region
      _
    $region5: #{tpu_custom_call.1} parent=1 // pred_fallthru
      _
    // Predicated region
    $region6: #{tpu_custom_call.1} parent=1 // pred_check
      _
    $region7: #{tpu_custom_call.1} parent=1 // pred_check_branch
      %14 = sbr.rel (0) target = $region9
    $region8: #{tpu_custom_call.1} parent=1 // pred_region
      _
    $region9: #{tpu_custom_call.1} parent=1 // pred_fallthru
      _
    // Predicated region
    $region10: #{tpu_custom_call.1} parent=1 // pred_check
      _
    $region11: #{tpu_custom_call.1} parent=1 // pred_check_branch
      %16 = sbr.rel (0) target = $region13
    $region12: #{tpu_custom_call.1} parent=1 // pred_region
      _
    $region13: #{tpu_custom_call.1} parent=1 // pred_fallthru
      _
    // Predicated region
    $region14: #{tpu_custom_call.1} parent=1 // pred_check
      _
    $region15: #{tpu_custom_call.1} parent=1 // pred_check_branch
      %18 = sbr.rel (0) target = $region17
    $region16: #{tpu_custom_call.1} parent=1 // pred_region
      _
    $region17: #{tpu_custom_call.1} parent=1 // pred_fallthru
      _
    // Predicated region
    $region18: #{tpu_custom_call.1} parent=1 // pred_check
      _
    $region19: #{tpu_custom_call.1} parent=1 // pred_check_branch
      %20 = sbr.rel (0) target = $region21
    $region20: #{tpu_custom_call.1} parent=1 // pred_region
      _
    $region21: #{tpu_custom_call.1} parent=1 // pred_fallthru
      _
    %v22 = vld [vmem:[%s0] sm:$0x1]
    %v23 = vpack.c.bf16 %v22, %v22
    %v24 = vld [vmem:[%s1] sm:$0xf]
    %v25 = vld [vmem:[%s1 + $0x4] sm:$0xf]
    %v26 = vld [vmem:[%s1 + $0x8] sm:$0xf]
    %v27 = vld [vmem:[%s1 + $0xc] sm:$0xf]
    %v28 = vld [vmem:[%s1 + $0x10] sm:$0xf]
    %v29 = vld [vmem:[%s1 + $0x14] sm:$0xf]
    %v30 = vld [vmem:[%s1 + $0x18] sm:$0xf]
    %v31 = vld [vmem:[%s1 + $0x1c] sm:$0xf]
    %v32 = vld [vmem:[%s1 + $0x20] sm:$0xf]
    %v33 = vld [vmem:[%s1 + $0x24] sm:$0xf]
    %v34 = vld [vmem:[%s1 + $0x28] sm:$0xf]
    %v35 = vld [vmem:[%s1 + $0x2c] sm:$0xf]
    %v36 = vld [vmem:[%s1 + $0x30] sm:$0xf]
    %v37 = vld [vmem:[%s1 + $0x34] sm:$0xf]
    %v38 = vld [vmem:[%s1 + $0x38] sm:$0xf]
    %v39 = vld [vmem:[%s1 + $0x3c] sm:$0xf]
    %v40 = vld [vmem:[%s2] sm:$0x1]
    %v57 = vunpack.c.l.b16 %v24
    %v58 = vunpack.c.l.b16 %v25
    %v59 = vunpack.c.l.b16 %v26
    %v60 = vunpack.c.l.b16 %v27
    %v61 = vunpack.c.l.b16 %v28
    %v62 = vunpack.c.l.b16 %v29
    %v63 = vunpack.c.l.b16 %v30
    %v64 = vunpack.c.l.b16 %v31
    %v65 = vunpack.c.l.b16 %v32
    %v66 = vunpack.c.l.b16 %v33
    %v67 = vunpack.c.l.b16 %v34
    %v68 = vunpack.c.l.b16 %v35
    %v69 = vunpack.c.l.b16 %v36
    %v70 = vunpack.c.l.b16 %v37
    %v71 = vunpack.c.l.b16 %v38
    %v72 = vunpack.c.l.b16 %v39
    %v73 = vpack.c.b16 %v58, %v57
    %v74 = vpack.c.b16 %v60, %v59
    %v75 = vpack.c.b16 %v62, %v61
    %v76 = vpack.c.b16 %v64, %v63
    %v77 = vpack.c.b16 %v66, %v65
    %v78 = vpack.c.b16 %v68, %v67
    %v79 = vpack.c.b16 %v70, %v69
    %v80 = vpack.c.b16 %v72, %v71
    %89 = vmatprep.subr.bf16.mxu0 0
    %90 = vmatpush1.bf16.msra.mxu0 %v80
    %91 = vmatprep.subr.bf16.mxu0 0
    %92 = vmatpush1.bf16.msra.mxu0 %v79
    %93 = vmatprep.subr.bf16.mxu0 0
    %94 = vmatpush1.bf16.msra.mxu0 %v78
    %95 = vmatprep.subr.bf16.mxu0 0
    %96 = vmatpush1.bf16.msra.mxu0 %v77
    %97 = vmatprep.subr.bf16.mxu0 0
    %98 = vmatpush1.bf16.msra.mxu0 %v76
    %99 = vmatprep.subr.bf16.mxu0 0
    %100 = vmatpush1.bf16.msra.mxu0 %v75
    %101 = vmatprep.subr.bf16.mxu0 0
    %102 = vmatpush1.bf16.msra.mxu0 %v74
    %103 = vmatprep.subr.bf16.mxu0 0
    %104 = vmatpush1.bf16.msra.mxu0 %v73
    %105 = vmatprep.subr.bf16.mxu0 0
    %106 = vmatpush2.bf16.msra.mxu0 0
    %107 = vmatprep.subr.bf16.mxu0 0
    %108 = vmatpush2.bf16.msra.mxu0 0
    %109 = vmatprep.subr.bf16.mxu0 0
    %110 = vmatpush2.bf16.msra.mxu0 0
    %111 = vmatprep.subr.bf16.mxu0 0
    %112 = vmatpush2.bf16.msra.mxu0 0
    %113 = vmatprep.subr.bf16.mxu0 0
    %114 = vmatpush2.bf16.msra.mxu0 0
    %115 = vmatprep.subr.bf16.mxu0 0
    %116 = vmatpush2.bf16.msra.mxu0 0
    %117 = vmatprep.subr.bf16.mxu0 0
    %118 = vmatpush2.bf16.msra.mxu0 0
    %119 = vmatprep.subr.bf16.mxu0 0
    %120 = vmatpush2.bf16.msra.mxu0 0
    %121 = vmatprep.mubr.bf16.mxu0 0
    %122 = vmatmul.mubr.bf16.gmra.mxu0 %v23
    %v123 = vpop.f32.mrf.mxu0
    %v124 = vadd.f32 %v40, %v123
    %v125 = vpop.f32.mrf.mxu0
    %v126 = vpop.f32.mrf.mxu0
    %v127 = vpop.f32.mrf.mxu0
    %128 = vdwg.mxu0
    %v129 = vmax.f32 %v124, 0.0
    %v130 = vld [vmem:[%s3] sm:$0xff]
    %v131 = vld [vmem:[%s3 + $0x8] sm:$0xff]
    %v132 = vld [vmem:[%s3 + $0x10] sm:$0xff]
    %v133 = vld [vmem:[%s3 + $0x18] sm:$0xff]
    %v134 = vld [vmem:[%s3 + $0x20] sm:$0xff]
    %v135 = vld [vmem:[%s3 + $0x28] sm:$0xff]
    %v136 = vld [vmem:[%s3 + $0x30] sm:$0xff]
    %v137 = vld [vmem:[%s3 + $0x38] sm:$0xff]
    %v138 = vld [vmem:[%s4] sm:$0x1]
    %vm139 = vcmask 523264
    %v141 = vsel %vm139, %v129, 0
    %143 = vmatprep.subr.mxu0 0.0
    %144 = vmatpush1.msra.mxu0 0.0
    %145 = vmatprep.subr.mxu0 0.0
    %146 = vmatpush1.msra.mxu0 0.0
    %147 = vmatprep.subr.mxu0 0.0
    %148 = vmatpush1.msra.mxu0 0.0
    %149 = vmatprep.subr.mxu0 0.0
    %150 = vmatpush1.msra.mxu0 0.0
    %151 = vmatprep.subr.mxu0 0.0
    %152 = vmatpush1.msra.mxu0 0.0
    %153 = vmatprep.subr.mxu0 0.0
    %154 = vmatpush1.msra.mxu0 0.0
    %155 = vmatprep.subr.mxu0 0.0
    %156 = vmatpush1.msra.mxu0 0.0
    %157 = vmatprep.subr.mxu0 0.0
    %158 = vmatpush1.msra.mxu0 0.0
    %159 = vmatprep.subr.mxu0 0.0
    %160 = vmatpush1.msra.mxu0 %v137
    %161 = vmatprep.subr.mxu0 0.0
    %162 = vmatpush1.msra.mxu0 %v136
    %163 = vmatprep.subr.mxu0 0.0
    %164 = vmatpush1.msra.mxu0 %v135
    %165 = vmatprep.subr.mxu0 0.0
    %166 = vmatpush1.msra.mxu0 %v134
    %167 = vmatprep.subr.mxu0 0.0
    %168 = vmatpush1.msra.mxu0 %v133
    %169 = vmatprep.subr.mxu0 0.0
    %170 = vmatpush1.msra.mxu0 %v132
    %171 = vmatprep.subr.mxu0 0.0
    %172 = vmatpush1.msra.mxu0 %v131
    %173 = vmatprep.subr.mxu0 0.0
    %174 = vmatpush1.msra.mxu0 %v130
    %175 = vmatprep.subr.mxu0 0.0
    %176 = vmatpush2.msra.mxu0 0.0
    %177 = vmatprep.subr.mxu0 0.0
    %178 = vmatpush2.msra.mxu0 0.0
    %179 = vmatprep.subr.mxu0 0.0
    %180 = vmatpush2.msra.mxu0 0.0
    %181 = vmatprep.subr.mxu0 0.0
    %182 = vmatpush2.msra.mxu0 0.0
    %183 = vmatprep.subr.mxu0 0.0
    %184 = vmatpush2.msra.mxu0 0.0
    %185 = vmatprep.subr.mxu0 0.0
    %186 = vmatpush2.msra.mxu0 0.0
    %187 = vmatprep.subr.mxu0 0.0
    %188 = vmatpush2.msra.mxu0 0.0
    %189 = vmatprep.subr.mxu0 0.0
    %190 = vmatpush2.msra.mxu0 0.0
    %191 = vmatprep.subr.mxu0 0.0
    %192 = vmatpush2.msra.mxu0 0.0
    %193 = vmatprep.subr.mxu0 0.0
    %194 = vmatpush2.msra.mxu0 0.0
    %195 = vmatprep.subr.mxu0 0.0
    %196 = vmatpush2.msra.mxu0 0.0
    %197 = vmatprep.subr.mxu0 0.0
    %198 = vmatpush2.msra.mxu0 0.0
    %199 = vmatprep.subr.mxu0 0.0
    %200 = vmatpush2.msra.mxu0 0.0
    %201 = vmatprep.subr.mxu0 0.0
    %202 = vmatpush2.msra.mxu0 0.0
    %203 = vmatprep.subr.mxu0 0.0
    %204 = vmatpush2.msra.mxu0 0.0
    %205 = vmatprep.subr.mxu0 0.0
    %206 = vmatpush2.msra.mxu0 0.0
    %207 = vmatprep.mubr.f32.mxu0 0.0
    %208 = vmatmul.mubr.f32.gmra.mxu0 %v141
    %v209 = vpop.f32.mrf.mxu0
    %v210 = vadd.f32 %v138, %v209
    %v211 = vpop.f32.mrf.mxu0
    %212 = vdwg.mxu0
    %v213 = vxor.u32 %v210, 2147483648
    %v214 = vmul.f32 %v213, 1.442695
    %v215 = vpow.pop %v214
    %v216 = vadd.f32 %v215, 1.0
    %v217 = vrcp.pop %v216
    %v218 = vmul.f32 1.0, %v217
    %vm219 = vcmask 57344
    %220 = vst.msk [vmem:[#allocation2] sm:$0x1] %vm219, %v218
    // Predicated region
    $region22: #{tpu_custom_call.1} parent=1 // pred_check
      _
    $region23: #{tpu_custom_call.1} parent=1 // pred_check_branch
      %222 = sbr.rel (0) target = $region25
    $region24: #{tpu_custom_call.1} parent=1 // pred_region
      %s224 = ssub.s32 16, 16
      %225 = vsyncadd [#allocation3], %s224
      %s227 = sshll.u32 [#allocation2], 4
      %s228 = int_to_ptr.vmem [resolvable:$true] %s227
      %230 = dma.vmem_to_hbm [thread:$0]  %s228, 16, %s5, [#allocation3]
    $region25: #{tpu_custom_call.1} parent=1 // pred_fallthru
      _
    // Predicated region
    $region26: #{tpu_custom_call.1} parent=1 // pred_check
      _
    $region27: #{tpu_custom_call.1} parent=1 // pred_check_branch
      %232 = sbr.rel (0) target = $region29
    $region28: #{tpu_custom_call.1} parent=1 // pred_region
      %233 = dma.done [#allocation3], 16
    $region29: #{tpu_custom_call.1} parent=1 // pred_fallthru
      _
    %234 = vsyncpa [#allocation3], 1

</llo_original>
